<compile_context>
chip_gen: v7x
topology: tpu7x:2x2x1
jax: 0.10.0
libtpu: 0.0.40
codegen_flags: <defaults>
</compile_context>

<pallas_src>
import jax
import jax.numpy as jnp
from jax import lax
from jax.experimental import pallas as pl
from jax.experimental.pallas import tpu as pltpu


def _round_up(x, m):
    return (x + m - 1) // m * m


# ---------------------------------------------------------------------------
# Pallas kernels
# ---------------------------------------------------------------------------
def _conv_bn_stats_kernel(c0_ref, c1_ref, c2_ref, w_ref, y_ref, sum_ref, sq_ref):
    """One (n, od) output plane: three lane-dense MXU dots + partial BN stats.

    c{0,1,2}_ref : (Kp, L) bf16  im2col columns of padded depth planes
                                 2*od, 2*od+1, 2*od+2  (L = Ho*Wo, lane axis)
    w_ref        : (3, Cout, Kp) bf16
    y_ref        : (Cout, L)     bf16  conv output (bias dropped, see wrapper)
    sum_/sq_ref  : (Cout, 1)     f32   per-block partial BN statistics
    """
    acc = jnp.dot(w_ref[0], c0_ref[...], preferred_element_type=jnp.float32)
    acc = acc + jnp.dot(w_ref[1], c1_ref[...], preferred_element_type=jnp.float32)
    acc = acc + jnp.dot(w_ref[2], c2_ref[...], preferred_element_type=jnp.float32)

    y_ref[...] = acc.astype(y_ref.dtype)
    # BN partials from the f32 accumulator (before the bf16 downcast), reduced
    # once per block (single XLU pass) instead of once per output row.
    sum_ref[...] = jnp.sum(acc, axis=1, keepdims=True)
    sq_ref[...] = jnp.sum(acc * acc, axis=1, keepdims=True)


def _bn_relu_kernel(y_ref, scale_ref, shift_ref, o_ref):
    """Single vectorized y*scale + shift, ReLU over a lane-dense (Cout, L) block."""
    z = y_ref[...].astype(jnp.float32) * scale_ref[...] + shift_ref[...]
    o_ref[...] = jnp.maximum(z, 0.0).astype(o_ref.dtype)


# ---------------------------------------------------------------------------
# Wrapper
# ---------------------------------------------------------------------------
def conv3d_bn_relu(x, w, b, gamma, beta, *, stride=2, padding=1, eps=1e-5):
    # BatchNorm with batch statistics cancels a per-channel conv bias exactly,
    # so the bias is dead work (review item) -- accepted but unused.
    del b
    N, Cin, D, H, W = x.shape
    Cout, Cin_w, kd, kh, kw = w.shape
    assert Cin_w == Cin
    # TODO(synk): the depth-halo blocking assumes the module defaults
    # (kernel_size=3, stride=2, padding=1); generalize if other configs used.
    assert (kd, kh, kw) == (3, 3, 3) and stride == 2 and padding == 1

    Do = (D + 2 * padding - kd) // stride + 1
    Ho = (H + 2 * padding - kh) // stride + 1
    Wo = (W + 2 * padding - kw) // stride + 1
    L = Ho * Wo                                # lane / matmul-N dimension
    Dp = D + 2 * padding
    K9 = kh * kw * Cin
    Kp = _round_up(K9, 16)                     # bf16 sublane tile alignment

    # ---- one-shot XLA re-layout (~1.1x input bytes): lane-dense im2col cols --
    # cols[n, dp, (kb*3+kc)*Cin + ci, oh*Wo + ow] = x_pad[n, ci, dp, 2*oh+kb, 2*ow+kc]
    xp = jnp.pad(x.astype(jnp.bfloat16),
                 ((0, 0), (0, 0), (padding, padding),
                  (padding, padding), (padding, padding)))
    slabs = [xp[:, :, :, kb:kb + 2 * Ho - 1:2, kc:kc + 2 * Wo - 1:2]
             for kb in range(kh) for kc in range(kw)]          # (N,Cin,Dp,Ho,Wo)
    cols = jnp.stack(slabs, axis=2)                            # (N,Cin,9,Dp,Ho,Wo)
    cols = jnp.transpose(cols, (0, 3, 2, 1, 4, 5))             # (N,Dp,9,Cin,Ho,Wo)
    cols = cols.reshape(N, Dp, K9, L)
    cols = jnp.pad(cols, ((0, 0), (0, 0), (0, Kp - K9), (0, 0)))
    # TODO(synk): optionally pad L to a multiple of 128 for fully unmasked
    # lane tiles when Ho*Wo is not already large.

    # Weights as (kd, Cout, Kp), rows ordered (kh, kw, Cin) to match cols.
    w3 = jnp.transpose(w, (2, 3, 4, 1, 0)).reshape(kd, K9, Cout)
    w3 = jnp.pad(w3, ((0, 0), (0, Kp - K9), (0, 0)))
    w3 = jnp.transpose(w3, (0, 2, 1)).astype(jnp.bfloat16)     # (3, Cout, Kp)

    flops1 = 2 * N * Do * L * Cout * kd * K9
    bytes1 = (3 * N * Do * Kp * L * 2          # cols, re-read with 2-plane halo
              + kd * Cout * Kp * 2             # weights
              + N * Do * Cout * L * 2          # y (bf16)
              + 2 * N * Do * Cout * 4)         # partial stats

    # ---- pass 1: conv and per-block BN partial statistics -------------------
    y, psum, psq = pl.pallas_call(
        _conv_bn_stats_kernel,
        out_shape=(jax.ShapeDtypeStruct((N, Do, Cout, L), jnp.bfloat16),
                   jax.ShapeDtypeStruct((N, Do, Cout, 1), jnp.float32),
                   jax.ShapeDtypeStruct((N, Do, Cout, 1), jnp.float32)),
        grid=(N, Do),
        in_specs=[
            # Depth taps ka = 0, 1, 2 -> padded planes 2*od + ka (2-plane halo).
            # TODO(synk): consider pipeline_mode=pl.Buffered(3) on these specs.
            pl.BlockSpec((None, None, Kp, L), lambda n, od: (n, 2 * od, 0, 0)),
            pl.BlockSpec((None, None, Kp, L), lambda n, od: (n, 2 * od + 1, 0, 0)),
            pl.BlockSpec((None, None, Kp, L), lambda n, od: (n, 2 * od + 2, 0, 0)),
            pl.BlockSpec((kd, Cout, Kp), lambda n, od: (0, 0, 0)),
        ],
        out_specs=(
            pl.BlockSpec((None, None, Cout, L), lambda n, od: (n, od, 0, 0)),
            pl.BlockSpec((None, None, Cout, 1), lambda n, od: (n, od, 0, 0)),
            pl.BlockSpec((None, None, Cout, 1), lambda n, od: (n, od, 0, 0)),
        ),
        compiler_params=pltpu.CompilerParams(
            dimension_semantics=("parallel", "parallel"),
            vmem_limit_bytes=48 * 1024 * 1024),
        cost_estimate=pl.CostEstimate(flops=flops1, transcendentals=0,
                                      bytes_accessed=bytes1),
    )(cols, cols, cols, w3)

    # ---- finalize BatchNorm batch statistics (training-mode forward) in JAX --
    M = N * Do * L
    s = jnp.sum(psum, axis=(0, 1, 3))                  # (Cout,)
    q = jnp.sum(psq, axis=(0, 1, 3))
    mean = s / M
    # NOTE: E[y^2]-E[y]^2 in f32 is fine while |mean| << std (true here since
    # the bias is cancelled).  TODO(synk): shifted / Chan-style combine otherwise.
    var = q / M - mean * mean                          # biased var (BN training)
    inv = gamma.astype(jnp.float32) * lax.rsqrt(var + eps)
    scale = inv.reshape(Cout, 1)
    shift = (beta.astype(jnp.float32) - mean * inv).reshape(Cout, 1)

    flops2 = 3 * N * Do * Cout * L
    bytes2 = N * Do * Cout * L * (2 + 4) + 2 * Cout * 4

    # ---- pass 2: fused BN-affine + ReLU, lane-dense blocks -------------------
    out_p = pl.pallas_call(
        _bn_relu_kernel,
        out_shape=jax.ShapeDtypeStruct((N, Do, Cout, L), x.dtype),
        grid=(N, Do),
        in_specs=[
            pl.BlockSpec((None, None, Cout, L), lambda n, od: (n, od, 0, 0)),
            pl.BlockSpec((Cout, 1), lambda n, od: (0, 0)),
            pl.BlockSpec((Cout, 1), lambda n, od: (0, 0)),
        ],
        out_specs=pl.BlockSpec((None, None, Cout, L), lambda n, od: (n, od, 0, 0)),
        compiler_params=pltpu.CompilerParams(
            dimension_semantics=("parallel", "parallel")),
        cost_estimate=pl.CostEstimate(flops=flops2, transcendentals=0,
                                      bytes_accessed=bytes2),
    )(y, scale, shift)

    # NCDHW via one cheap XLA transpose of the (small) output tensor; kept
    # outside the kernels so every Pallas load/store stays lane-dense.
    out = out_p.reshape(N, Do, Cout, Ho, Wo)
    return jnp.transpose(out, (0, 2, 1, 3, 4))


# ---------------------------------------------------------------------------
# Pure-JAX reference (correctness check only)
# ---------------------------------------------------------------------------
def _reference(x, w, b, gamma, beta, *, stride=2, padding=1, eps=1e-5):
    y = lax.conv_general_dilated(
        x, w, (stride,) * 3, [(padding, padding)] * 3,
        dimension_numbers=("NCDHW", "OIDHW", "NCDHW"),
        precision=lax.Precision.HIGHEST,
    ) + b[None, :, None, None, None]
    mean = y.mean(axis=(0, 2, 3, 4), keepdims=True)
    var = y.var(axis=(0, 2, 3, 4), keepdims=True)
    yn = (y - mean) / jnp.sqrt(var + eps)
    yn = yn * gamma[None, :, None, None, None] + beta[None, :, None, None, None]
    return jnp.maximum(yn, 0.0)


if __name__ == "__main__":
    key = jax.random.PRNGKey(0)
    k_x, k_w, k_b = jax.random.split(key, 3)

    N, Cin, Cout = 2, 4, 16
    D = H = W = 8
    ksz = 3

    x = jax.random.normal(k_x, (N, Cin, D, H, W), dtype=jnp.float32)
    # Deterministic synthetic parameters (shapes from nn.Conv3d / nn.BatchNorm3d).
    fan_in = Cin * ksz ** 3
    w = jax.random.normal(k_w, (Cout, Cin, ksz, ksz, ksz),
                          dtype=jnp.float32) / jnp.sqrt(fan_in)
    b = 0.1 * jax.random.normal(k_b, (Cout,), dtype=jnp.float32)
    gamma = jnp.ones((Cout,), dtype=jnp.float32)   # BatchNorm3d default init
    beta = jnp.zeros((Cout,), dtype=jnp.float32)

    fn = jax.jit(conv3d_bn_relu)
    out = jax.block_until_ready(fn(x, w, b, gamma, beta))

    ref = _reference(x, w, b, gamma, beta)
    assert out.shape == ref.shape == (N, Cout, 4, 4, 4), (out.shape, ref.shape)
    # bf16 MXU operands / bf16 intermediate y (f32 accumulation & stats)
    # -> slightly looser tolerance than pure f32.
    assert jnp.allclose(out, ref, atol=3e-2, rtol=3e-2), \
        float(jnp.max(jnp.abs(out - ref)))

    print("KERNEL_OK")
</pallas_src>

<mosaic_0001>
module attributes {stable_mosaic.version = 11 : i64} {
  func.func @_conv_bn_stats_kernel(%arg0: i32, %arg1: i32, %arg2: memref<1x1x48x16xbf16, #tpu.memory_space<vmem>>, %arg3: memref<1x1x48x16xbf16, #tpu.memory_space<vmem>>, %arg4: memref<1x1x48x16xbf16, #tpu.memory_space<vmem>>, %arg5: memref<3x16x48xbf16, #tpu.memory_space<vmem>>, %arg6: memref<1x1x16x16xbf16, #tpu.memory_space<vmem>>, %arg7: memref<1x1x16x1xf32, #tpu.memory_space<vmem>>, %arg8: memref<1x1x16x1xf32, #tpu.memory_space<vmem>>) attributes {dimension_semantics = [#tpu.dimension_semantics<parallel>, #tpu.dimension_semantics<parallel>], iteration_bounds = array<i64: 2, 4>, scalar_prefetch = 0 : i64, scratch_operands = 0 : i64, tpu.core_type = #tpu.core_type<tc>, window_params = [{transform_indices = @transform_0, window_bounds = array<i64: 1, 1, 48, 16>}, {transform_indices = @transform_1, window_bounds = array<i64: 1, 1, 48, 16>}, {transform_indices = @transform_2, window_bounds = array<i64: 1, 1, 48, 16>}, {pipeline_mode = #tpu.pipeline_mode<synchronous>, transform_indices = @transform_3, window_bounds = array<i64: 3, 16, 48>}, {transform_indices = @transform_4, window_bounds = array<i64: 1, 1, 16, 16>}, {transform_indices = @transform_5, window_bounds = array<i64: 1, 1, 16, 1>}, {transform_indices = @transform_6, window_bounds = array<i64: 1, 1, 16, 1>}]} {
    %c0 = arith.constant 0 : index
    %c0_0 = arith.constant 0 : index
    %c0_1 = arith.constant 0 : index
    %0 = vector.load %arg5[%c0, %c0_0, %c0_1] : memref<3x16x48xbf16, #tpu.memory_space<vmem>>, vector<1x16x48xbf16>
    %1 = vector.shape_cast %0 : vector<1x16x48xbf16> to vector<16x48xbf16>
    %c0_2 = arith.constant 0 : index
    %c0_3 = arith.constant 0 : index
    %c0_4 = arith.constant 0 : index
    %c0_5 = arith.constant 0 : index
    %2 = vector.load %arg2[%c0_2, %c0_3, %c0_4, %c0_5] : memref<1x1x48x16xbf16, #tpu.memory_space<vmem>>, vector<1x1x48x16xbf16>
    %3 = vector.shape_cast %2 : vector<1x1x48x16xbf16> to vector<48x16xbf16>
    %cst = arith.constant dense<0.000000e+00> : vector<16x16xf32>
    %4 = tpu.matmul %1, %3, %cst {dimension_numbers = #tpu.dot_dimension_numbers<[1], [0], [0], [1], [0, 0, 1, 1], [], []>} : vector<16x48xbf16>, vector<48x16xbf16>, vector<16x16xf32> -> vector<16x16xf32>
    %c1 = arith.constant 1 : index
    %c0_6 = arith.constant 0 : index
    %c0_7 = arith.constant 0 : index
    %5 = vector.load %arg5[%c1, %c0_6, %c0_7] : memref<3x16x48xbf16, #tpu.memory_space<vmem>>, vector<1x16x48xbf16>
    %6 = vector.shape_cast %5 : vector<1x16x48xbf16> to vector<16x48xbf16>
    %c0_8 = arith.constant 0 : index
    %c0_9 = arith.constant 0 : index
    %c0_10 = arith.constant 0 : index
    %c0_11 = arith.constant 0 : index
    %7 = vector.load %arg3[%c0_8, %c0_9, %c0_10, %c0_11] : memref<1x1x48x16xbf16, #tpu.memory_space<vmem>>, vector<1x1x48x16xbf16>
    %8 = vector.shape_cast %7 : vector<1x1x48x16xbf16> to vector<48x16xbf16>
    %cst_12 = arith.constant dense<0.000000e+00> : vector<16x16xf32>
    %9 = tpu.matmul %6, %8, %cst_12 {dimension_numbers = #tpu.dot_dimension_numbers<[1], [0], [0], [1], [0, 0, 1, 1], [], []>} : vector<16x48xbf16>, vector<48x16xbf16>, vector<16x16xf32> -> vector<16x16xf32>
    %10 = arith.addf %4, %9 : vector<16x16xf32>
    %c2 = arith.constant 2 : index
    %c0_13 = arith.constant 0 : index
    %c0_14 = arith.constant 0 : index
    %11 = vector.load %arg5[%c2, %c0_13, %c0_14] : memref<3x16x48xbf16, #tpu.memory_space<vmem>>, vector<1x16x48xbf16>
    %12 = vector.shape_cast %11 : vector<1x16x48xbf16> to vector<16x48xbf16>
    %c0_15 = arith.constant 0 : index
    %c0_16 = arith.constant 0 : index
    %c0_17 = arith.constant 0 : index
    %c0_18 = arith.constant 0 : index
    %13 = vector.load %arg4[%c0_15, %c0_16, %c0_17, %c0_18] : memref<1x1x48x16xbf16, #tpu.memory_space<vmem>>, vector<1x1x48x16xbf16>
    %14 = vector.shape_cast %13 : vector<1x1x48x16xbf16> to vector<48x16xbf16>
    %cst_19 = arith.constant dense<0.000000e+00> : vector<16x16xf32>
    %15 = tpu.matmul %12, %14, %cst_19 {dimension_numbers = #tpu.dot_dimension_numbers<[1], [0], [0], [1], [0, 0, 1, 1], [], []>} : vector<16x48xbf16>, vector<48x16xbf16>, vector<16x16xf32> -> vector<16x16xf32>
    %16 = arith.addf %10, %15 : vector<16x16xf32>
    %17 = arith.truncf %16 : vector<16x16xf32> to vector<16x16xbf16>
    %c0_20 = arith.constant 0 : index
    %c0_21 = arith.constant 0 : index
    %c0_22 = arith.constant 0 : index
    %c0_23 = arith.constant 0 : index
    %18 = vector.load %arg6[%c0_20, %c0_21, %c0_22, %c0_23] : memref<1x1x16x16xbf16, #tpu.memory_space<vmem>>, vector<1x1x16x16xbf16>
    %19 = vector.shape_cast %18 : vector<1x1x16x16xbf16> to vector<16x16xbf16>
    %20 = vector.shape_cast %17 : vector<16x16xbf16> to vector<1x1x16x16xbf16>
    tpu.vector_store %arg6[%c0_20, %c0_21, %c0_22, %c0_23], %20 {strides = array<i32>} : memref<1x1x16x16xbf16, #tpu.memory_space<vmem>>, vector<1x1x16x16xbf16>,
    %cst_24 = arith.constant dense<0.000000e+00> : vector<16xf32>
    %21 = vector.multi_reduction <add>, %16, %cst_24 [1] : vector<16x16xf32> to vector<16xf32>
    %22 = vector.shape_cast %21 : vector<16xf32> to vector<16x1xf32>
    %c0_25 = arith.constant 0 : index
    %c0_26 = arith.constant 0 : index
    %c0_27 = arith.constant 0 : index
    %c0_28 = arith.constant 0 : index
    %23 = vector.load %arg7[%c0_25, %c0_26, %c0_27, %c0_28] : memref<1x1x16x1xf32, #tpu.memory_space<vmem>>, vector<1x1x16x1xf32>
    %24 = vector.shape_cast %23 : vector<1x1x16x1xf32> to vector<16x1xf32>
    %25 = vector.shape_cast %22 : vector<16x1xf32> to vector<1x1x16x1xf32>
    tpu.vector_store %arg7[%c0_25, %c0_26, %c0_27, %c0_28], %25 {strides = array<i32>} : memref<1x1x16x1xf32, #tpu.memory_space<vmem>>, vector<1x1x16x1xf32>,
    %26 = arith.mulf %16, %16 : vector<16x16xf32>
    %cst_29 = arith.constant dense<0.000000e+00> : vector<16xf32>
    %27 = vector.multi_reduction <add>, %26, %cst_29 [1] : vector<16x16xf32> to vector<16xf32>
    %28 = vector.shape_cast %27 : vector<16xf32> to vector<16x1xf32>
    %c0_30 = arith.constant 0 : index
    %c0_31 = arith.constant 0 : index
    %c0_32 = arith.constant 0 : index
    %c0_33 = arith.constant 0 : index
    %29 = vector.load %arg8[%c0_30, %c0_31, %c0_32, %c0_33] : memref<1x1x16x1xf32, #tpu.memory_space<vmem>>, vector<1x1x16x1xf32>
    %30 = vector.shape_cast %29 : vector<1x1x16x1xf32> to vector<16x1xf32>
    %31 = vector.shape_cast %28 : vector<16x1xf32> to vector<1x1x16x1xf32>
    tpu.vector_store %arg8[%c0_30, %c0_31, %c0_32, %c0_33], %31 {strides = array<i32>} : memref<1x1x16x1xf32, #tpu.memory_space<vmem>>, vector<1x1x16x1xf32>,
    return
  }
  func.func @transform_0(%arg0: i32, %arg1: i32) -> (i32, i32, i32, i32) {
    %c2_i32 = arith.constant 2 : i32
    %0 = arith.muli %c2_i32, %arg1 : i32
    %c0_i32 = arith.constant 0 : i32
    %c0_i32_0 = arith.constant 0 : i32
    %c0_i32_1 = arith.constant 0 : i32
    return %arg0, %0, %c0_i32, %c0_i32_0 : i32, i32, i32, i32
  }
  func.func @transform_1(%arg0: i32, %arg1: i32) -> (i32, i32, i32, i32) {
    %c2_i32 = arith.constant 2 : i32
    %0 = arith.muli %c2_i32, %arg1 : i32
    %c1_i32 = arith.constant 1 : i32
    %1 = arith.addi %0, %c1_i32 : i32
    %c0_i32 = arith.constant 0 : i32
    %c0_i32_0 = arith.constant 0 : i32
    %c0_i32_1 = arith.constant 0 : i32
    return %arg0, %1, %c0_i32, %c0_i32_0 : i32, i32, i32, i32
  }
  func.func @transform_2(%arg0: i32, %arg1: i32) -> (i32, i32, i32, i32) {
    %c2_i32 = arith.constant 2 : i32
    %0 = arith.muli %c2_i32, %arg1 : i32
    %c2_i32_0 = arith.constant 2 : i32
    %1 = arith.addi %0, %c2_i32_0 : i32
    %c0_i32 = arith.constant 0 : i32
    %c0_i32_1 = arith.constant 0 : i32
    %c0_i32_2 = arith.constant 0 : i32
    return %arg0, %1, %c0_i32, %c0_i32_1 : i32, i32, i32, i32
  }
  func.func @transform_3(%arg0: i32, %arg1: i32) -> (i32, i32, i32) {
    %c0_i32 = arith.constant 0 : i32
    %c0_i32_0 = arith.constant 0 : i32
    %c0_i32_1 = arith.constant 0 : i32
    %c0_i32_2 = arith.constant 0 : i32
    return %c0_i32, %c0_i32_0, %c0_i32_1 : i32, i32, i32
  }
  func.func @transform_4(%arg0: i32, %arg1: i32) -> (i32, i32, i32, i32) {
    %c0_i32 = arith.constant 0 : i32
    %c0_i32_0 = arith.constant 0 : i32
    %c0_i32_1 = arith.constant 0 : i32
    return %arg0, %arg1, %c0_i32, %c0_i32_0 : i32, i32, i32, i32
  }
  func.func @transform_5(%arg0: i32, %arg1: i32) -> (i32, i32, i32, i32) {
    %c0_i32 = arith.constant 0 : i32
    %c0_i32_0 = arith.constant 0 : i32
    %c0_i32_1 = arith.constant 0 : i32
    return %arg0, %arg1, %c0_i32, %c0_i32_0 : i32, i32, i32, i32
  }
  func.func @transform_6(%arg0: i32, %arg1: i32) -> (i32, i32, i32, i32) {
    %c0_i32 = arith.constant 0 : i32
    %c0_i32_0 = arith.constant 0 : i32
    %c0_i32_1 = arith.constant 0 : i32
    return %arg0, %arg1, %c0_i32, %c0_i32_0 : i32, i32, i32, i32
  }
}

module attributes {stable_mosaic.version = 11 : i64} {
  func.func @_bn_relu_kernel(%arg0: i32, %arg1: i32, %arg2: memref<1x1x16x16xbf16, #tpu.memory_space<vmem>>, %arg3: memref<16x1xf32, #tpu.memory_space<vmem>>, %arg4: memref<16x1xf32, #tpu.memory_space<vmem>>, %arg5: memref<1x1x16x16xf32, #tpu.memory_space<vmem>>) attributes {dimension_semantics = [#tpu.dimension_semantics<parallel>, #tpu.dimension_semantics<parallel>], iteration_bounds = array<i64: 2, 4>, scalar_prefetch = 0 : i64, scratch_operands = 0 : i64, tpu.core_type = #tpu.core_type<tc>, window_params = [{transform_indices = @transform_0, window_bounds = array<i64: 1, 1, 16, 16>}, {pipeline_mode = #tpu.pipeline_mode<synchronous>, transform_indices = @transform_1, window_bounds = array<i64: 16, 1>}, {pipeline_mode = #tpu.pipeline_mode<synchronous>, transform_indices = @transform_2, window_bounds = array<i64: 16, 1>}, {transform_indices = @transform_3, window_bounds = array<i64: 1, 1, 16, 16>}]} {
    %c0 = arith.constant 0 : index
    %c0_0 = arith.constant 0 : index
    %c0_1 = arith.constant 0 : index
    %c0_2 = arith.constant 0 : index
    %0 = vector.load %arg2[%c0, %c0_0, %c0_1, %c0_2] : memref<1x1x16x16xbf16, #tpu.memory_space<vmem>>, vector<1x1x16x16xbf16>
    %1 = vector.shape_cast %0 : vector<1x1x16x16xbf16> to vector<16x16xbf16>
    %2 = arith.extf %1 : vector<16x16xbf16> to vector<16x16xf32>
    %c0_3 = arith.constant 0 : index
    %c0_4 = arith.constant 0 : index
    %3 = vector.load %arg3[%c0_3, %c0_4] : memref<16x1xf32, #tpu.memory_space<vmem>>, vector<16x1xf32>
    %4 = vector.broadcast %3 : vector<16x1xf32> to vector<16x16xf32>
    %5 = arith.mulf %2, %4 : vector<16x16xf32>
    %c0_5 = arith.constant 0 : index
    %c0_6 = arith.constant 0 : index
    %6 = vector.load %arg4[%c0_5, %c0_6] : memref<16x1xf32, #tpu.memory_space<vmem>>, vector<16x1xf32>
    %7 = vector.broadcast %6 : vector<16x1xf32> to vector<16x16xf32>
    %8 = arith.addf %5, %7 : vector<16x16xf32>
    %cst = arith.constant 0.000000e+00 : f32
    %9 = vector.broadcast %cst : f32 to vector<16x16xf32>
    %10 = arith.maximumf %8, %9 : vector<16x16xf32>
    %c0_7 = arith.constant 0 : index
    %c0_8 = arith.constant 0 : index
    %c0_9 = arith.constant 0 : index
    %c0_10 = arith.constant 0 : index
    %11 = vector.load %arg5[%c0_7, %c0_8, %c0_9, %c0_10] : memref<1x1x16x16xf32, #tpu.memory_space<vmem>>, vector<1x1x16x16xf32>
    %12 = vector.shape_cast %11 : vector<1x1x16x16xf32> to vector<16x16xf32>
    %13 = vector.shape_cast %10 : vector<16x16xf32> to vector<1x1x16x16xf32>
    tpu.vector_store %arg5[%c0_7, %c0_8, %c0_9, %c0_10], %13 {strides = array<i32>} : memref<1x1x16x16xf32, #tpu.memory_space<vmem>>, vector<1x1x16x16xf32>,
    return
  }
  func.func @transform_0(%arg0: i32, %arg1: i32) -> (i32, i32, i32, i32) {
    %c0_i32 = arith.constant 0 : i32
    %c0_i32_0 = arith.constant 0 : i32
    %c0_i32_1 = arith.constant 0 : i32
    return %arg0, %arg1, %c0_i32, %c0_i32_0 : i32, i32, i32, i32
  }
  func.func @transform_1(%arg0: i32, %arg1: i32) -> (i32, i32) {
    %c0_i32 = arith.constant 0 : i32
    %c0_i32_0 = arith.constant 0 : i32
    %c0_i32_1 = arith.constant 0 : i32
    return %c0_i32, %c0_i32_0 : i32, i32
  }
  func.func @transform_2(%arg0: i32, %arg1: i32) -> (i32, i32) {
    %c0_i32 = arith.constant 0 : i32
    %c0_i32_0 = arith.constant 0 : i32
    %c0_i32_1 = arith.constant 0 : i32
    return %c0_i32, %c0_i32_0 : i32, i32
  }
  func.func @transform_3(%arg0: i32, %arg1: i32) -> (i32, i32, i32, i32) {
    %c0_i32 = arith.constant 0 : i32
    %c0_i32_0 = arith.constant 0 : i32
    %c0_i32_1 = arith.constant 0 : i32
    return %arg0, %arg1, %c0_i32, %c0_i32_0 : i32, i32, i32, i32
  }
}

</mosaic_0001>

<llo_original>
// kernel: conv3d_bn_relu.2
$region0: #{conv3d_bn_relu.2}
  #allocation0 [shape = 'u32[]', space=smem, size = 0x4, offset = 0x4, fixed_abs, tag = 'smem constant byte address 0x4 - core index']
  #allocation1 [shape = 'u32[144,128]{1,0:T(1,128)}', space=vmem, size = 0x12000, scoped, tag = 'internal scratch']
  %s0 = inlined_call_operand.vmem [shape: bf16[2,10,48,16], index: 0, kind: input, shape index: {}, may-alias: {0,1,2}]
  %s1 = inlined_call_operand.vmem [shape: bf16[2,10,48,16], index: 1, kind: input, shape index: {}, may-alias: {0,1,2}]
  %s2 = inlined_call_operand.vmem [shape: bf16[2,10,48,16], index: 2, kind: input, shape index: {}, may-alias: {0,1,2}]
  %s3 = inlined_call_operand.vmem [shape: bf16[3,16,48], index: 3, kind: input, shape index: {}]
  %s4 = inlined_call_operand.vmem [shape: bf16[2,4,16,16], index: 4, kind: output, shape index: {0}]
  %s5 = inlined_call_operand.vmem [shape: f32[2,4,16,1], index: 5, kind: output, shape index: {1}]
  %s6 = inlined_call_operand.vmem [shape: f32[2,4,16,1], index: 6, kind: output, shape index: {2}]
  %7 = xla_tuple %s4, %s5, %s6
  %s8 = sld [smem:[#allocation0]]
  $region65: #{conv3d_bn_relu.2} parent=0
    _
  %s10 = ssub.s32 1, %s8
  %s11 = scalar_select 0, %s10, %s8
  loop: start=0, step=1, limit=10
  $region2: #{conv3d_bn_relu.2} parent=0 // loop_pre_header
    _
  $region3: #{conv3d_bn_relu.2} parent=0 // loop_header
    %s13 = sphi 0, %s17
    %p14 = scmp.ge.s32.totalorder %s13, 10
    %s20 = sphi 0, %s32
    %s21 = sphi 0, %s28
    %s22 = sphi 0, %s20
    %s23 = sphi 0, %s21
    %s24 = sphi 0, %s22
    %s25 = sphi 0, %s23
    %s39 = sphi 0, %s41
    %s42 = sphi 0, %s39
    %s43 = sphi 0, %s42
    %s59 = sphi 0, %s43
    %s71 = sphi 0, %s73
    %s74 = sphi 0, %s71
    %s75 = sphi 0, %s74
    %s91 = sphi 0, %s75
    %s103 = sphi 0, %s105
    %s106 = sphi 0, %s103
    %s107 = sphi 0, %s106
    %s123 = sphi 0, %s107
    %s127 = sphi 0, %s127
    %s129 = sphi 0, %s127
    %s130 = sphi 0, %s129
    %s144 = sphi 0, %s130
    %s152 = sphi 0, %s154
    %s155 = sphi 0, %s152
    %s156 = sphi 0, %s155
    %s172 = sphi 0, %s156
    %s180 = sphi 0, %s182
    %s183 = sphi 0, %s180
    %s184 = sphi 0, %s183
    %s200 = sphi 0, %s184
    %s208 = sphi 0, %s210
    %s211 = sphi 0, %s208
    %s212 = sphi 0, %s211
    %s228 = sphi 0, %s212
  $region4: #{conv3d_bn_relu.2} parent=0 // loop_header_branch
    %16 = sbr.rel (%p14) target = $region8
  $region5: #{conv3d_bn_relu.2} parent=0 // loop_body
    %s18 = ssub.s32 %s13, 1
    %s19 = ssub.s32 %s13, 2
    %s26 = sadd.s32 1, %s21
    %p27 = scmp.ge.s32.totalorder %s26, 4
    %s28 = scalar_select %p27, 0, %s26
    %s29 = sadd.s32 1, %s20
    %s30 = scalar_select %p27, %s29, %s20
    %p31 = scmp.ge.s32.totalorder %s30, 2
    %s32 = scalar_select %p31, 0, %s30
    %s33 = smul.u32 %s21, 2
    %s34 = smul.u32 %s28, 2
    %s35 = ssub.s32 %s20, %s32
    %s36 = ssub.s32 %s33, %s34
    %s37 = sor.u32 %s35, %s36
    %p38 = scmp.eq.s32.totalorder %s37, 0
    %s40 = sadd.s32 %s39, 1
    %s41 = scalar_select %p38, %s39, %s40
    %p44 = pneg %p38
    %p45 = scmp.eq.s32.totalorder %s13, 7
    %p46 = por %p44, %p45
    %p47 = scmp.ne.s32.totalorder %s39, %s42
    %p48 = scmp.eq.s32.totalorder %s13, 0
    %p49 = por %p47, %p48
    %p50 = scmp.ne.s32.totalorder %s39, %s42
    %p51 = scmp.eq.s32.totalorder %s18, 7
    %p52 = por %p50, %p51
    %p53 = scmp.ne.s32.totalorder %s42, %s43
    %p54 = scmp.eq.s32.totalorder %s18, 0
    %p55 = por %p53, %p54
    %p56 = scmp.ne.s32.totalorder %s42, %s43
    %p57 = scmp.eq.s32.totalorder %s19, 7
    %p58 = por %p56, %p57
    %p60 = scmp.ne.s32.totalorder %s43, %s59
    %p61 = scmp.eq.s32.totalorder %s19, 0
    %p62 = por %p60, %p61
    %s63 = smul.u32 %s21, 2
    %s64 = sadd.s32 %s63, 1
    %s65 = smul.u32 %s28, 2
    %s66 = sadd.s32 %s65, 1
    %s67 = ssub.s32 %s20, %s32
    %s68 = ssub.s32 %s64, %s66
    %s69 = sor.u32 %s67, %s68
    %p70 = scmp.eq.s32.totalorder %s69, 0
    %s72 = sadd.s32 %s71, 1
    %s73 = scalar_select %p70, %s71, %s72
    %p76 = pneg %p70
    %p77 = scmp.eq.s32.totalorder %s13, 7
    %p78 = por %p76, %p77
    %p79 = scmp.ne.s32.totalorder %s71, %s74
    %p80 = scmp.eq.s32.totalorder %s13, 0
    %p81 = por %p79, %p80
    %p82 = scmp.ne.s32.totalorder %s71, %s74
    %p83 = scmp.eq.s32.totalorder %s18, 7
    %p84 = por %p82, %p83
    %p85 = scmp.ne.s32.totalorder %s74, %s75
    %p86 = scmp.eq.s32.totalorder %s18, 0
    %p87 = por %p85, %p86
    %p88 = scmp.ne.s32.totalorder %s74, %s75
    %p89 = scmp.eq.s32.totalorder %s19, 7
    %p90 = por %p88, %p89
    %p92 = scmp.ne.s32.totalorder %s75, %s91
    %p93 = scmp.eq.s32.totalorder %s19, 0
    %p94 = por %p92, %p93
    %s95 = smul.u32 %s21, 2
    %s96 = sadd.s32 %s95, 2
    %s97 = smul.u32 %s28, 2
    %s98 = sadd.s32 %s97, 2
    %s99 = ssub.s32 %s20, %s32
    %s100 = ssub.s32 %s96, %s98
    %s101 = sor.u32 %s99, %s100
    %p102 = scmp.eq.s32.totalorder %s101, 0
    %s104 = sadd.s32 %s103, 1
    %s105 = scalar_select %p102, %s103, %s104
    %p108 = pneg %p102
    %p109 = scmp.eq.s32.totalorder %s13, 7
    %p110 = por %p108, %p109
    %p111 = scmp.ne.s32.totalorder %s103, %s106
    %p112 = scmp.eq.s32.totalorder %s13, 0
    %p113 = por %p111, %p112
    %p114 = scmp.ne.s32.totalorder %s103, %s106
    %p115 = scmp.eq.s32.totalorder %s18, 7
    %p116 = por %p114, %p115
    %p117 = scmp.ne.s32.totalorder %s106, %s107
    %p118 = scmp.eq.s32.totalorder %s18, 0
    %p119 = por %p117, %p118
    %p120 = scmp.ne.s32.totalorder %s106, %s107
    %p121 = scmp.eq.s32.totalorder %s19, 7
    %p122 = por %p120, %p121
    %p124 = scmp.ne.s32.totalorder %s107, %s123
    %p125 = scmp.eq.s32.totalorder %s19, 0
    %p126 = por %p124, %p125
    %s128 = sadd.s32 %s127, 1
    %p131 = scmp.eq.s32.totalorder %s13, 7
    %p132 = scmp.ne.s32.totalorder %s127, %s129
    %p133 = scmp.eq.s32.totalorder %s13, 0
    %p134 = por %p132, %p133
    %p135 = scmp.ne.s32.totalorder %s127, %s129
    %p136 = scmp.eq.s32.totalorder %s18, 7
    %p137 = por %p135, %p136
    %p138 = scmp.ne.s32.totalorder %s129, %s130
    %p139 = scmp.eq.s32.totalorder %s18, 0
    %p140 = por %p138, %p139
    %p141 = scmp.ne.s32.totalorder %s129, %s130
    %p142 = scmp.eq.s32.totalorder %s19, 7
    %p143 = por %p141, %p142
    %p145 = scmp.ne.s32.totalorder %s130, %s144
    %p146 = scmp.eq.s32.totalorder %s19, 0
    %p147 = por %p145, %p146
    %s148 = ssub.s32 %s20, %s32
    %s149 = ssub.s32 %s21, %s28
    %s150 = sor.u32 %s148, %s149
    %p151 = scmp.eq.s32.totalorder %s150, 0
    %s153 = sadd.s32 %s152, 1
    %s154 = scalar_select %p151, %s152, %s153
    %p157 = pneg %p151
    %p158 = scmp.eq.s32.totalorder %s13, 7
    %p159 = por %p157, %p158
    %p160 = scmp.ne.s32.totalorder %s152, %s155
    %p161 = scmp.eq.s32.totalorder %s13, 0
    %p162 = por %p160, %p161
    %p163 = scmp.ne.s32.totalorder %s152, %s155
    %p164 = scmp.eq.s32.totalorder %s18, 7
    %p165 = por %p163, %p164
    %p166 = scmp.ne.s32.totalorder %s155, %s156
    %p167 = scmp.eq.s32.totalorder %s18, 0
    %p168 = por %p166, %p167
    %p169 = scmp.ne.s32.totalorder %s155, %s156
    %p170 = scmp.eq.s32.totalorder %s19, 7
    %p171 = por %p169, %p170
    %p173 = scmp.ne.s32.totalorder %s156, %s172
    %p174 = scmp.eq.s32.totalorder %s19, 0
    %p175 = por %p173, %p174
    %s176 = ssub.s32 %s20, %s32
    %s177 = ssub.s32 %s21, %s28
    %s178 = sor.u32 %s176, %s177
    %p179 = scmp.eq.s32.totalorder %s178, 0
    %s181 = sadd.s32 %s180, 1
    %s182 = scalar_select %p179, %s180, %s181
    %p185 = pneg %p179
    %p186 = scmp.eq.s32.totalorder %s13, 7
    %p187 = por %p185, %p186
    %p188 = scmp.ne.s32.totalorder %s180, %s183
    %p189 = scmp.eq.s32.totalorder %s13, 0
    %p190 = por %p188, %p189
    %p191 = scmp.ne.s32.totalorder %s180, %s183
    %p192 = scmp.eq.s32.totalorder %s18, 7
    %p193 = por %p191, %p192
    %p194 = scmp.ne.s32.totalorder %s183, %s184
    %p195 = scmp.eq.s32.totalorder %s18, 0
    %p196 = por %p194, %p195
    %p197 = scmp.ne.s32.totalorder %s183, %s184
    %p198 = scmp.eq.s32.totalorder %s19, 7
    %p199 = por %p197, %p198
    %p201 = scmp.ne.s32.totalorder %s184, %s200
    %p202 = scmp.eq.s32.totalorder %s19, 0
    %p203 = por %p201, %p202
    %s204 = ssub.s32 %s20, %s32
    %s205 = ssub.s32 %s21, %s28
    %s206 = sor.u32 %s204, %s205
    %p207 = scmp.eq.s32.totalorder %s206, 0
    %s209 = sadd.s32 %s208, 1
    %s210 = scalar_select %p207, %s208, %s209
    %p213 = pneg %p207
    %p214 = scmp.eq.s32.totalorder %s13, 7
    %p215 = por %p213, %p214
    %p216 = scmp.ne.s32.totalorder %s208, %s211
    %p217 = scmp.eq.s32.totalorder %s13, 0
    %p218 = por %p216, %p217
    %p219 = scmp.ne.s32.totalorder %s208, %s211
    %p220 = scmp.eq.s32.totalorder %s18, 7
    %p221 = por %p219, %p220
    %p222 = scmp.ne.s32.totalorder %s211, %s212
    %p223 = scmp.eq.s32.totalorder %s18, 0
    %p224 = por %p222, %p223
    %p225 = scmp.ne.s32.totalorder %s211, %s212
    %p226 = scmp.eq.s32.totalorder %s19, 7
    %p227 = por %p225, %p226
    %p229 = scmp.ne.s32.totalorder %s212, %s228
    %p230 = scmp.eq.s32.totalorder %s19, 0
    %p231 = por %p229, %p230
    %p232 = scmp.le.s32.totalorder 1, %s13
    %p233 = scmp.lt.s32.totalorder %s13, 9
    %p234 = pnand %p232, %p233
    %p235 = pneg %p234
    // Predicated region
    $region9: #{conv3d_bn_relu.2} parent=5 // pred_check
      _
    $region10: #{conv3d_bn_relu.2} parent=5 // pred_check_branch
      %237 = sbr.rel (%p234) target = $region12
    $region11: #{conv3d_bn_relu.2} parent=5 // pred_region
      %s238 = ssub.s32 %s13, 1
      // Predicated region
      $region13: #{conv3d_bn_relu.2} parent=11 // pred_check
        %p239 = pneg %p140
      $region14: #{conv3d_bn_relu.2} parent=11 // pred_check_branch
        %241 = sbr.rel (%p239) target = $region16
      $region15: #{conv3d_bn_relu.2} parent=11 // pred_region
        _
      $region16: #{conv3d_bn_relu.2} parent=11 // pred_fallthru
        _
    $region12: #{conv3d_bn_relu.2} parent=5 // pred_fallthru
      _
    %p242 = scmp.lt.s32.totalorder %s13, 8
    // Predicated region
    $region17: #{conv3d_bn_relu.2} parent=5 // pred_check
      %p243 = pneg %p242
    $region18: #{conv3d_bn_relu.2} parent=5 // pred_check_branch
      %245 = sbr.rel (%p243) target = $region20
    $region19: #{conv3d_bn_relu.2} parent=5 // pred_region
      // Predicated region
      $region21: #{conv3d_bn_relu.2} parent=19 // pred_check
        %p246 = pneg %p49
      $region22: #{conv3d_bn_relu.2} parent=19 // pred_check_branch
        %248 = sbr.rel (%p246) target = $region24
      $region23: #{conv3d_bn_relu.2} parent=19 // pred_region
        %s249 = smul.u32 %s21, 2
        %p250 = scmp.lt.s32.totalorder %s20, 1
        %s251 = scalar_select %p250, %s20, 1
        %p252 = scmp.lt.s32.totalorder %s249, 9
        %s253 = scalar_select %p252, %s249, 9
        %s254 = smul.addr %s253, 6
        %s255 = smul.addr %s251, 60
        %s256 = sadd.s32 %s254, %s255
        %s257 = smul.addr %s256, 4
        %s258 = scalar_lea.vmem %s0, %s257
        %s259 = smul.u32 %s21, 2
      $region24: #{conv3d_bn_relu.2} parent=19 // pred_fallthru
        _
      // Predicated region
      $region25: #{conv3d_bn_relu.2} parent=19 // pred_check
        %p260 = pneg %p81
      $region26: #{conv3d_bn_relu.2} parent=19 // pred_check_branch
        %262 = sbr.rel (%p260) target = $region28
      $region27: #{conv3d_bn_relu.2} parent=19 // pred_region
        %s263 = smul.u32 %s21, 2
        %s264 = sadd.s32 %s263, 1
        %p265 = scmp.lt.s32.totalorder %s20, 1
        %s266 = scalar_select %p265, %s20, 1
        %p267 = scmp.lt.s32.totalorder %s264, 9
        %s268 = scalar_select %p267, %s264, 9
        %s269 = smul.addr %s268, 6
        %s270 = smul.addr %s266, 60
        %s271 = sadd.s32 %s269, %s270
        %s272 = smul.addr %s271, 4
        %s273 = scalar_lea.vmem %s1, %s272
        %s274 = smul.u32 %s21, 2
        %s275 = sadd.s32 %s274, 1
      $region28: #{conv3d_bn_relu.2} parent=19 // pred_fallthru
        _
      // Predicated region
      $region29: #{conv3d_bn_relu.2} parent=19 // pred_check
        %p276 = pneg %p113
      $region30: #{conv3d_bn_relu.2} parent=19 // pred_check_branch
        %278 = sbr.rel (%p276) target = $region32
      $region31: #{conv3d_bn_relu.2} parent=19 // pred_region
        %s279 = smul.u32 %s21, 2
        %s280 = sadd.s32 %s279, 2
        %p281 = scmp.lt.s32.totalorder %s20, 1
        %s282 = scalar_select %p281, %s20, 1
        %p283 = scmp.lt.s32.totalorder %s280, 9
        %s284 = scalar_select %p283, %s280, 9
        %s285 = smul.addr %s284, 6
        %s286 = smul.addr %s282, 60
        %s287 = sadd.s32 %s285, %s286
        %s288 = smul.addr %s287, 4
        %s289 = scalar_lea.vmem %s2, %s288
        %s290 = smul.u32 %s21, 2
        %s291 = sadd.s32 %s290, 2
      $region32: #{conv3d_bn_relu.2} parent=19 // pred_fallthru
        _
    $region20: #{conv3d_bn_relu.2} parent=5 // pred_fallthru
      _
    %p292 = scmp.le.s32.totalorder 1, %s13
    %p293 = scmp.lt.s32.totalorder %s13, 9
    %p294 = pnand %p292, %p293
    %p295 = pneg %p294
    // Predicated region
    $region33: #{conv3d_bn_relu.2} parent=5 // pred_check
      _
    $region34: #{conv3d_bn_relu.2} parent=5 // pred_check_branch
      %297 = sbr.rel (%p294) target = $region36
    $region35: #{conv3d_bn_relu.2} parent=5 // pred_region
      %s298 = ssub.s32 %s13, 1
      %s299 = smul.u32 %s23, 2
      %p300 = scmp.lt.s32.totalorder %s22, 1
      %s301 = scalar_select %p300, %s22, 1
      %p302 = scmp.lt.s32.totalorder %s299, 9
      %s303 = scalar_select %p302, %s299, 9
      %s304 = smul.addr %s303, 6
      %s305 = smul.addr %s301, 60
      %s306 = sadd.s32 %s304, %s305
      %s307 = smul.addr %s306, 4
      %s308 = scalar_lea.vmem %s0, %s307
      %p309 = pneg %p55
      %p310 = pneg %p52
      %s311 = smul.u32 %s23, 2
      %s312 = sadd.s32 %s311, 1
      %p313 = scmp.lt.s32.totalorder %s22, 1
      %s314 = scalar_select %p313, %s22, 1
      %p315 = scmp.lt.s32.totalorder %s312, 9
      %s316 = scalar_select %p315, %s312, 9
      %s317 = smul.addr %s316, 6
      %s318 = smul.addr %s314, 60
      %s319 = sadd.s32 %s317, %s318
      %s320 = smul.addr %s319, 4
      %s321 = scalar_lea.vmem %s1, %s320
      %p322 = pneg %p87
      %p323 = pneg %p84
      %s324 = smul.u32 %s23, 2
      %s325 = sadd.s32 %s324, 2
      %p326 = scmp.lt.s32.totalorder %s22, 1
      %s327 = scalar_select %p326, %s22, 1
      %p328 = scmp.lt.s32.totalorder %s325, 9
      %s329 = scalar_select %p328, %s325, 9
      %s330 = smul.addr %s329, 6
      %s331 = smul.addr %s327, 60
      %s332 = sadd.s32 %s330, %s331
      %s333 = smul.addr %s332, 4
      %s334 = scalar_lea.vmem %s2, %s333
      %p335 = pneg %p119
      %p336 = pneg %p116
      %p337 = pneg %p140
      %p338 = pneg %p137
      %p339 = pneg %p168
      %p340 = pneg %p165
      %p341 = scmp.lt.s32.totalorder %s22, 1
      %s342 = scalar_select %p341, %s22, 1
      %p343 = scmp.lt.s32.totalorder %s23, 3
      %s344 = scalar_select %p343, %s23, 3
      %s345 = smul.addr %s344, 2
      %s346 = smul.addr %s342, 8
      %s347 = sadd.s32 %s345, %s346
      %s348 = smul.addr %s347, 4
      %s349 = scalar_lea.vmem %s4, %s348
      %p350 = pneg %p196
      %p351 = pneg %p193
      %p352 = scmp.lt.s32.totalorder %s22, 1
      %s353 = scalar_select %p352, %s22, 1
      %p354 = scmp.lt.s32.totalorder %s23, 3
      %s355 = scalar_select %p354, %s23, 3
      %s356 = smul.addr %s355, 2
      %s357 = smul.addr %s353, 8
      %s358 = sadd.s32 %s356, %s357
      %s359 = smul.addr %s358, 8
      %s360 = scalar_lea.vmem %s5, %s359
      %p361 = pneg %p224
      %p362 = pneg %p221
      %p363 = scmp.lt.s32.totalorder %s22, 1
      %s364 = scalar_select %p363, %s22, 1
      %p365 = scmp.lt.s32.totalorder %s23, 3
      %s366 = scalar_select %p365, %s23, 3
      %s367 = smul.addr %s366, 2
      %s368 = smul.addr %s364, 8
      %s369 = sadd.s32 %s367, %s368
      %s370 = smul.addr %s369, 8
      %s371 = scalar_lea.vmem %s6, %s370
      %s372 = smul.u32 %s23, 2
      %p373 = scmp.lt.s32.totalorder %s22, 1
      %s374 = scalar_select %p373, %s22, 1
      %p375 = scmp.lt.s32.totalorder %s372, 9
      %s376 = scalar_select %p375, %s372, 9
      %s377 = smul.addr %s376, 6
      %s378 = smul.addr %s374, 60
      %s379 = sadd.s32 %s377, %s378
      %s380 = smul.addr %s379, 4
      %s381 = scalar_lea.vmem %s0, %s380
      %s382 = smul.u32 %s23, 2
      %s383 = smul.u32 %s23, 2
      %s384 = sadd.s32 %s383, 1
      %p385 = scmp.lt.s32.totalorder %s22, 1
      %s386 = scalar_select %p385, %s22, 1
      %p387 = scmp.lt.s32.totalorder %s384, 9
      %s388 = scalar_select %p387, %s384, 9
      %s389 = smul.addr %s388, 6
      %s390 = smul.addr %s386, 60
      %s391 = sadd.s32 %s389, %s390
      %s392 = smul.addr %s391, 4
      %s393 = scalar_lea.vmem %s1, %s392
      %s394 = smul.u32 %s23, 2
      %s395 = sadd.s32 %s394, 1
      %s396 = smul.u32 %s23, 2
      %s397 = sadd.s32 %s396, 2
      %p398 = scmp.lt.s32.totalorder %s22, 1
      %s399 = scalar_select %p398, %s22, 1
      %p400 = scmp.lt.s32.totalorder %s397, 9
      %s401 = scalar_select %p400, %s397, 9
      %s402 = smul.addr %s401, 6
      %s403 = smul.addr %s399, 60
      %s404 = sadd.s32 %s402, %s403
      %s405 = smul.addr %s404, 4
      %s406 = scalar_lea.vmem %s2, %s405
      %s407 = smul.u32 %s23, 2
      %s408 = sadd.s32 %s407, 2
      %p409 = scmp.lt.s32.totalorder %s22, 1
      %s410 = scalar_select %p409, %s22, 1
      %p411 = scmp.lt.s32.totalorder %s23, 3
      %s412 = scalar_select %p411, %s23, 3
      %s413 = smul.addr %s412, 2
      %s414 = smul.addr %s410, 8
      %s415 = sadd.s32 %s413, %s414
      %s416 = smul.addr %s415, 4
      %s417 = scalar_lea.vmem %s4, %s416
      %p418 = scmp.lt.s32.totalorder %s22, 1
      %s419 = scalar_select %p418, %s22, 1
      %p420 = scmp.lt.s32.totalorder %s23, 3
      %s421 = scalar_select %p420, %s23, 3
      %s422 = smul.addr %s421, 2
      %s423 = smul.addr %s419, 8
      %s424 = sadd.s32 %s422, %s423
      %s425 = smul.addr %s424, 8
      %s426 = scalar_lea.vmem %s5, %s425
      %p427 = scmp.lt.s32.totalorder %s22, 1
      %s428 = scalar_select %p427, %s22, 1
      %p429 = scmp.lt.s32.totalorder %s23, 3
      %s430 = scalar_select %p429, %s23, 3
      %s431 = smul.addr %s430, 2
      %s432 = smul.addr %s428, 8
      %s433 = sadd.s32 %s431, %s432
      %s434 = smul.addr %s433, 8
      %s435 = scalar_lea.vmem %s6, %s434
      %v437 = vld [vmem:[%s3] sm:$0xf]
      %v438 = vld [vmem:[%s3 + $0x4] sm:$0xf]
      %v439 = vld [vmem:[%s381] sm:$0xf]
      %v440 = vld [vmem:[%s381 + $0x4] sm:$0xf]
      %v441 = vld [vmem:[%s381 + $0x8] sm:$0xf]
      %v442 = vld [vmem:[%s381 + $0xc] sm:$0xf]
      %v443 = vld [vmem:[%s381 + $0x10] sm:$0xf]
      %v444 = vld [vmem:[%s381 + $0x14] sm:$0xf]
      %s445 = scalar_lea.vmem %s3, 8
      %v446 = vld [vmem:[%s445] sm:$0xf]
      %v447 = vld [vmem:[%s445 + $0x4] sm:$0xf]
      %v448 = vld [vmem:[%s393] sm:$0xf]
      %v449 = vld [vmem:[%s393 + $0x4] sm:$0xf]
      %v450 = vld [vmem:[%s393 + $0x8] sm:$0xf]
      %v451 = vld [vmem:[%s393 + $0xc] sm:$0xf]
      %v452 = vld [vmem:[%s393 + $0x10] sm:$0xf]
      %v453 = vld [vmem:[%s393 + $0x14] sm:$0xf]
      %v456 = vunpack.c.l.b16 %v446
      %v457 = vunpack.c.l.b16 %v447
      %v458 = vpack.c.b16 %v457, %v456
      %v465 = vunpack.c.l.b16 %v448
      %v466 = vunpack.c.l.b16 %v449
      %v467 = vunpack.c.l.b16 %v450
      %v468 = vunpack.c.l.b16 %v451
      %v469 = vunpack.c.l.b16 %v452
      %v470 = vunpack.c.l.b16 %v453
      %v471 = vpack.c.b16 %v466, %v465
      %v472 = vpack.c.b16 %v468, %v467
      %v473 = vpack.c.b16 %v470, %v469
      %vm477 = vcmask 392192
      %v479 = vsel %vm477, %v458, 0
      %481 = vmatprep.subr.bf16.mxu0 0
      %482 = vmatpush1.bf16.msra.mxu0 %v471
      %483 = vmatprep.subr.bf16.mxu0 0
      %484 = vmatpush1.bf16.msra.mxu0 %v472
      %485 = vmatprep.subr.bf16.mxu0 0
      %486 = vmatpush1.bf16.msra.mxu0 %v473
      %487 = vmatprep.subr.bf16.mxu0 0
      %488 = vmatpush1.bf16.msra.mxu0 0
      %489 = vmatprep.subr.bf16.mxu0 0
      %490 = vmatpush1.bf16.msra.mxu0 0
      %491 = vmatprep.subr.bf16.mxu0 0
      %492 = vmatpush1.bf16.msra.mxu0 0
      %493 = vmatprep.subr.bf16.mxu0 0
      %494 = vmatpush1.bf16.msra.mxu0 0
      %495 = vmatprep.subr.bf16.mxu0 0
      %496 = vmatpush1.bf16.msra.mxu0 0
      %497 = vmatprep.subr.bf16.mxu0 0
      %498 = vmatpush1.bf16.msra.mxu0 0
      %499 = vmatprep.subr.bf16.mxu0 0
      %500 = vmatpush1.bf16.msra.mxu0 0
      %501 = vmatprep.subr.bf16.mxu0 0
      %502 = vmatpush1.bf16.msra.mxu0 0
      %503 = vmatprep.subr.bf16.mxu0 0
      %504 = vmatpush1.bf16.msra.mxu0 0
      %505 = vmatprep.subr.bf16.mxu0 0
      %506 = vmatpush1.bf16.msra.mxu0 0
      %507 = vmatprep.subr.bf16.mxu0 0
      %508 = vmatpush1.bf16.msra.mxu0 0
      %509 = vmatprep.subr.bf16.mxu0 0
      %510 = vmatpush1.bf16.msra.mxu0 0
      %511 = vmatprep.subr.bf16.mxu0 0
      %512 = vmatpush1.bf16.msra.mxu0 0
      %513 = vmatprep.mubr.bf16.mxu0 0
      %514 = vmatmul.mubr.bf16.gmra.mrb[0].mxu0 %v479
      %v515 = vpop.f32.mrb[0].mxu0
      %v516 = vadd.f32 0.0, %v515
      %v517 = vpop.f32.mrb[0].mxu0
      %v518 = vpop.f32.mrb[0].mxu0
      %v519 = vadd.f32 0.0, %v518
      %v520 = vpop.f32.mrb[0].mxu0
      %521 = vdwg.mxu0
      %v524 = vunpack.c.l.b16 %v437
      %v525 = vunpack.c.l.b16 %v438
      %v526 = vpack.c.b16 %v525, %v524
      %v533 = vunpack.c.l.b16 %v439
      %v534 = vunpack.c.l.b16 %v440
      %v535 = vunpack.c.l.b16 %v441
      %v536 = vunpack.c.l.b16 %v442
      %v537 = vunpack.c.l.b16 %v443
      %v538 = vunpack.c.l.b16 %v444
      %v539 = vpack.c.b16 %v534, %v533
      %v540 = vpack.c.b16 %v536, %v535
      %v541 = vpack.c.b16 %v538, %v537
      %v546 = vsel %vm477, %v526, 0
      %548 = vmatprep.subr.bf16.mxu0 0
      %549 = vmatpush1.bf16.msra.mxu0 %v539
      %550 = vmatprep.subr.bf16.mxu0 0
      %551 = vmatpush1.bf16.msra.mxu0 %v540
      %552 = vmatprep.subr.bf16.mxu0 0
      %553 = vmatpush1.bf16.msra.mxu0 %v541
      %554 = vmatprep.subr.bf16.mxu0 0
      %555 = vmatpush1.bf16.msra.mxu0 0
      %556 = vmatprep.subr.bf16.mxu0 0
      %557 = vmatpush1.bf16.msra.mxu0 0
      %558 = vmatprep.subr.bf16.mxu0 0
      %559 = vmatpush1.bf16.msra.mxu0 0
      %560 = vmatprep.subr.bf16.mxu0 0
      %561 = vmatpush1.bf16.msra.mxu0 0
      %562 = vmatprep.subr.bf16.mxu0 0
      %563 = vmatpush1.bf16.msra.mxu0 0
      %564 = vmatprep.subr.bf16.mxu0 0
      %565 = vmatpush1.bf16.msra.mxu0 0
      %566 = vmatprep.subr.bf16.mxu0 0
      %567 = vmatpush1.bf16.msra.mxu0 0
      %568 = vmatprep.subr.bf16.mxu0 0
      %569 = vmatpush1.bf16.msra.mxu0 0
      %570 = vmatprep.subr.bf16.mxu0 0
      %571 = vmatpush1.bf16.msra.mxu0 0
      %572 = vmatprep.subr.bf16.mxu0 0
      %573 = vmatpush1.bf16.msra.mxu0 0
      %574 = vmatprep.subr.bf16.mxu0 0
      %575 = vmatpush1.bf16.msra.mxu0 0
      %576 = vmatprep.subr.bf16.mxu0 0
      %577 = vmatpush1.bf16.msra.mxu0 0
      %578 = vmatprep.subr.bf16.mxu0 0
      %579 = vmatpush1.bf16.msra.mxu0 0
      %580 = vmatprep.mubr.bf16.mxu0 0
      %581 = vmatmul.mubr.bf16.gmra.mrb[0].mxu0 %v546
      %v582 = vpop.f32.mrb[0].mxu0
      %v583 = vadd.f32 %v516, %v582
      %v584 = vpop.f32.mrb[0].mxu0
      %v585 = vpop.f32.mrb[0].mxu0
      %v586 = vadd.f32 %v519, %v585
      %v587 = vpop.f32.mrb[0].mxu0
      %588 = vdwg.mxu0
      %s589 = scalar_lea.vmem %s3, 16
      %v590 = vld [vmem:[%s589] sm:$0xf]
      %v591 = vld [vmem:[%s589 + $0x4] sm:$0xf]
      %v592 = vld [vmem:[%s406] sm:$0xf]
      %v593 = vld [vmem:[%s406 + $0x4] sm:$0xf]
      %v594 = vld [vmem:[%s406 + $0x8] sm:$0xf]
      %v595 = vld [vmem:[%s406 + $0xc] sm:$0xf]
      %v596 = vld [vmem:[%s406 + $0x10] sm:$0xf]
      %v597 = vld [vmem:[%s406 + $0x14] sm:$0xf]
      %v600 = vunpack.c.l.b16 %v590
      %v601 = vunpack.c.l.b16 %v591
      %v602 = vpack.c.b16 %v601, %v600
      %v609 = vunpack.c.l.b16 %v592
      %v610 = vunpack.c.l.b16 %v593
      %v611 = vunpack.c.l.b16 %v594
      %v612 = vunpack.c.l.b16 %v595
      %v613 = vunpack.c.l.b16 %v596
      %v614 = vunpack.c.l.b16 %v597
      %v615 = vpack.c.b16 %v610, %v609
      %v616 = vpack.c.b16 %v612, %v611
      %v617 = vpack.c.b16 %v614, %v613
      %v622 = vsel %vm477, %v602, 0
      %624 = vmatprep.subr.bf16.mxu0 0
      %625 = vmatpush1.bf16.msra.mxu0 %v615
      %626 = vmatprep.subr.bf16.mxu0 0
      %627 = vmatpush1.bf16.msra.mxu0 %v616
      %628 = vmatprep.subr.bf16.mxu0 0
      %629 = vmatpush1.bf16.msra.mxu0 %v617
      %630 = vmatprep.subr.bf16.mxu0 0
      %631 = vmatpush1.bf16.msra.mxu0 0
      %632 = vmatprep.subr.bf16.mxu0 0
      %633 = vmatpush1.bf16.msra.mxu0 0
      %634 = vmatprep.subr.bf16.mxu0 0
      %635 = vmatpush1.bf16.msra.mxu0 0
      %636 = vmatprep.subr.bf16.mxu0 0
      %637 = vmatpush1.bf16.msra.mxu0 0
      %638 = vmatprep.subr.bf16.mxu0 0
      %639 = vmatpush1.bf16.msra.mxu0 0
      %640 = vmatprep.subr.bf16.mxu0 0
      %641 = vmatpush1.bf16.msra.mxu0 0
      %642 = vmatprep.subr.bf16.mxu0 0
      %643 = vmatpush1.bf16.msra.mxu0 0
      %644 = vmatprep.subr.bf16.mxu0 0
      %645 = vmatpush1.bf16.msra.mxu0 0
      %646 = vmatprep.subr.bf16.mxu0 0
      %647 = vmatpush1.bf16.msra.mxu0 0
      %648 = vmatprep.subr.bf16.mxu0 0
      %649 = vmatpush1.bf16.msra.mxu0 0
      %650 = vmatprep.subr.bf16.mxu0 0
      %651 = vmatpush1.bf16.msra.mxu0 0
      %652 = vmatprep.subr.bf16.mxu0 0
      %653 = vmatpush1.bf16.msra.mxu0 0
      %654 = vmatprep.subr.bf16.mxu0 0
      %655 = vmatpush1.bf16.msra.mxu0 0
      %656 = vmatprep.mubr.bf16.mxu0 0
      %657 = vmatmul.mubr.bf16.gmra.mrb[0].mxu0 %v622
      %v658 = vpop.f32.mrb[0].mxu0
      %v659 = vadd.f32 0.0, %v658
      %v660 = vpop.f32.mrb[0].mxu0
      %v661 = vpop.f32.mrb[0].mxu0
      %v662 = vadd.f32 0.0, %v661
      %v663 = vpop.f32.mrb[0].mxu0
      %664 = vdwg.mxu0
      %v665 = vadd.f32 %v583, %v659
      %v666 = vadd.f32 %v586, %v662
      %v667 = vpack.c.bf16 %v666, %v665
      %v669 = vunpack.c.l.b16 %v667
      %v670 = vunpack.c.h.b16 %v667
      %v671 = vpack.c.b16 %v669, %v669
      %v672 = vpack.c.b16 %v670, %v670
      %vm675 = vcmask 125952
      %676 = vst.msk [vmem:[%s417] sm:$0xf] %vm675, %v671
      %677 = vst.msk [vmem:[%s417 + $0x4] sm:$0xf] %vm675, %v672
      %vm678 = vcmask 130048
      %v679 = vsel %vm678, %v665, 0.0
      %680 = vadd.xlane.f32.xlu0 %v679
      %v681 = vpop.xlane.xlu0 %680
      %v682 = vsel %vm678, %v666, 0.0
      %683 = vadd.xlane.f32.xlu0 %v682
      %v684 = vpop.xlane.xlu0 %683
      %vm685 = vcmask 7168
      %686 = vst.msk [vmem:[%s426] sm:$0xff] %vm685, %v681
      %687 = vst.msk [vmem:[%s426 + $0x8] sm:$0xff] %vm685, %v684
      %v688 = vmul.f32 %v665, %v665
      %v689 = vmul.f32 %v666, %v666
      %v690 = vsel %vm678, %v688, 0.0
      %691 = vadd.xlane.f32.xlu0 %v690
      %v692 = vpop.xlane.xlu0 %691
      %v693 = vsel %vm678, %v689, 0.0
      %694 = vadd.xlane.f32.xlu0 %v693
      %v695 = vpop.xlane.xlu0 %694
      %696 = vst.msk [vmem:[%s435] sm:$0xff] %vm685, %v692
      %697 = vst.msk [vmem:[%s435 + $0x8] sm:$0xff] %vm685, %v695
      %p698 = scmp.lt.s32.totalorder %s22, 1
      %s699 = scalar_select %p698, %s22, 1
      %p700 = scmp.lt.s32.totalorder %s23, 3
      %s701 = scalar_select %p700, %s23, 3
      %s702 = smul.addr %s701, 2
      %s703 = smul.addr %s699, 8
      %s704 = sadd.s32 %s702, %s703
      %s705 = smul.addr %s704, 4
      %s706 = scalar_lea.vmem %s4, %s705
      %p707 = scmp.lt.s32.totalorder %s22, 1
      %s708 = scalar_select %p707, %s22, 1
      %p709 = scmp.lt.s32.totalorder %s23, 3
      %s710 = scalar_select %p709, %s23, 3
      %s711 = smul.addr %s710, 2
      %s712 = smul.addr %s708, 8
      %s713 = sadd.s32 %s711, %s712
      %s714 = smul.addr %s713, 8
      %s715 = scalar_lea.vmem %s5, %s714
      %p716 = scmp.lt.s32.totalorder %s22, 1
      %s717 = scalar_select %p716, %s22, 1
      %p718 = scmp.lt.s32.totalorder %s23, 3
      %s719 = scalar_select %p718, %s23, 3
      %s720 = smul.addr %s719, 2
      %s721 = smul.addr %s717, 8
      %s722 = sadd.s32 %s720, %s721
      %s723 = smul.addr %s722, 8
      %s724 = scalar_lea.vmem %s6, %s723
      // Predicated region
      $region37: #{conv3d_bn_relu.2} parent=35 // pred_check
        %p725 = pneg %p165
      $region38: #{conv3d_bn_relu.2} parent=35 // pred_check_branch
        %727 = sbr.rel (%p725) target = $region40
      $region39: #{conv3d_bn_relu.2} parent=35 // pred_region
        _
      $region40: #{conv3d_bn_relu.2} parent=35 // pred_fallthru
        _
      // Predicated region
      $region41: #{conv3d_bn_relu.2} parent=35 // pred_check
        %p728 = pneg %p193
      $region42: #{conv3d_bn_relu.2} parent=35 // pred_check_branch
        %730 = sbr.rel (%p728) target = $region44
      $region43: #{conv3d_bn_relu.2} parent=35 // pred_region
        _
      $region44: #{conv3d_bn_relu.2} parent=35 // pred_fallthru
        _
      // Predicated region
      $region45: #{conv3d_bn_relu.2} parent=35 // pred_check
        %p731 = pneg %p221
      $region46: #{conv3d_bn_relu.2} parent=35 // pred_check_branch
        %733 = sbr.rel (%p731) target = $region48
      $region47: #{conv3d_bn_relu.2} parent=35 // pred_region
        _
      $region48: #{conv3d_bn_relu.2} parent=35 // pred_fallthru
        _
    $region36: #{conv3d_bn_relu.2} parent=5 // pred_fallthru
      _
    %p734 = scmp.le.s32.totalorder 2, %s13
    // Predicated region
    $region49: #{conv3d_bn_relu.2} parent=5 // pred_check
      %p735 = pneg %p734
    $region50: #{conv3d_bn_relu.2} parent=5 // pred_check_branch
      %737 = sbr.rel (%p735) target = $region52
    $region51: #{conv3d_bn_relu.2} parent=5 // pred_region
      %s738 = ssub.s32 %s13, 2
      // Predicated region
      $region53: #{conv3d_bn_relu.2} parent=51 // pred_check
        %p739 = pneg %p171
      $region54: #{conv3d_bn_relu.2} parent=51 // pred_check_branch
        %741 = sbr.rel (%p739) target = $region56
      $region55: #{conv3d_bn_relu.2} parent=51 // pred_region
        %p742 = scmp.lt.s32.totalorder %s24, 1
        %s743 = scalar_select %p742, %s24, 1
        %p744 = scmp.lt.s32.totalorder %s25, 3
        %s745 = scalar_select %p744, %s25, 3
        %s746 = smul.addr %s745, 2
        %s747 = smul.addr %s743, 8
        %s748 = sadd.s32 %s746, %s747
        %s749 = smul.addr %s748, 4
        %s750 = scalar_lea.vmem %s4, %s749
      $region56: #{conv3d_bn_relu.2} parent=51 // pred_fallthru
        _
      // Predicated region
      $region57: #{conv3d_bn_relu.2} parent=51 // pred_check
        %p751 = pneg %p199
      $region58: #{conv3d_bn_relu.2} parent=51 // pred_check_branch
        %753 = sbr.rel (%p751) target = $region60
      $region59: #{conv3d_bn_relu.2} parent=51 // pred_region
        %p754 = scmp.lt.s32.totalorder %s24, 1
        %s755 = scalar_select %p754, %s24, 1
        %p756 = scmp.lt.s32.totalorder %s25, 3
        %s757 = scalar_select %p756, %s25, 3
        %s758 = smul.addr %s757, 2
        %s759 = smul.addr %s755, 8
        %s760 = sadd.s32 %s758, %s759
        %s761 = smul.addr %s760, 8
        %s762 = scalar_lea.vmem %s5, %s761
      $region60: #{conv3d_bn_relu.2} parent=51 // pred_fallthru
        _
      // Predicated region
      $region61: #{conv3d_bn_relu.2} parent=51 // pred_check
        %p763 = pneg %p227
      $region62: #{conv3d_bn_relu.2} parent=51 // pred_check_branch
        %765 = sbr.rel (%p763) target = $region64
      $region63: #{conv3d_bn_relu.2} parent=51 // pred_region
        %p766 = scmp.lt.s32.totalorder %s24, 1
        %s767 = scalar_select %p766, %s24, 1
        %p768 = scmp.lt.s32.totalorder %s25, 3
        %s769 = scalar_select %p768, %s25, 3
        %s770 = smul.addr %s769, 2
        %s771 = smul.addr %s767, 8
        %s772 = sadd.s32 %s770, %s771
        %s773 = smul.addr %s772, 8
        %s774 = scalar_lea.vmem %s6, %s773
      $region64: #{conv3d_bn_relu.2} parent=51 // pred_fallthru
        _
    $region52: #{conv3d_bn_relu.2} parent=5 // pred_fallthru
      _
  $region6: #{conv3d_bn_relu.2} parent=0 // loop_footer
    %s17 = sadd.s32 1, %s13
  $region7: #{conv3d_bn_relu.2} parent=0 // loop_footer_branch
    %12 = sbr.rel target = $region3
  $region8: #{conv3d_bn_relu.2} parent=0 // loop_exit
    _

// kernel: conv3d_bn_relu.3
$region0: #{conv3d_bn_relu.3}
  #allocation0 [shape = 'u32[]', space=smem, size = 0x4, offset = 0x4, fixed_abs, tag = 'smem constant byte address 0x4 - core index']
  #allocation1 [shape = 'u32[144,128]{1,0:T(1,128)}', space=vmem, size = 0x12000, scoped, tag = 'internal scratch']
  %s0 = inlined_call_operand.vmem [shape: bf16[2,4,16,16], index: 0, kind: input, shape index: {}]
  %s1 = inlined_call_operand.vmem [shape: f32[16,1], index: 1, kind: input, shape index: {}]
  %s2 = inlined_call_operand.vmem [shape: f32[16,1], index: 2, kind: input, shape index: {}]
  %s3 = inlined_call_operand.vmem [shape: f32[2,4,16,16], index: 3, kind: output, shape index: {}]
  %s4 = sld [smem:[#allocation0]]
  $region45: #{conv3d_bn_relu.3} parent=0
    _
  %s6 = ssub.s32 1, %s4
  %s7 = scalar_select 0, %s6, %s4
  loop: start=0, step=1, limit=10
  $region2: #{conv3d_bn_relu.3} parent=0 // loop_pre_header
    _
  $region3: #{conv3d_bn_relu.3} parent=0 // loop_header
    %s9 = sphi 0, %s13
    %p10 = scmp.ge.s32.totalorder %s9, 10
    %s16 = sphi 0, %s28
    %s17 = sphi 0, %s24
    %s18 = sphi 0, %s16
    %s19 = sphi 0, %s17
    %s20 = sphi 0, %s18
    %s21 = sphi 0, %s19
    %s33 = sphi 0, %s35
    %s36 = sphi 0, %s33
    %s37 = sphi 0, %s36
    %s53 = sphi 0, %s37
    %s57 = sphi 0, %s57
    %s59 = sphi 0, %s57
    %s60 = sphi 0, %s59
    %s74 = sphi 0, %s60
    %s78 = sphi 0, %s78
    %s80 = sphi 0, %s78
    %s81 = sphi 0, %s80
    %s95 = sphi 0, %s81
    %s103 = sphi 0, %s105
    %s106 = sphi 0, %s103
    %s107 = sphi 0, %s106
    %s123 = sphi 0, %s107
  $region4: #{conv3d_bn_relu.3} parent=0 // loop_header_branch
    %12 = sbr.rel (%p10) target = $region8
  $region5: #{conv3d_bn_relu.3} parent=0 // loop_body
    %s14 = ssub.s32 %s9, 1
    %s15 = ssub.s32 %s9, 2
    %s22 = sadd.s32 1, %s17
    %p23 = scmp.ge.s32.totalorder %s22, 4
    %s24 = scalar_select %p23, 0, %s22
    %s25 = sadd.s32 1, %s16
    %s26 = scalar_select %p23, %s25, %s16
    %p27 = scmp.ge.s32.totalorder %s26, 2
    %s28 = scalar_select %p27, 0, %s26
    %s29 = ssub.s32 %s16, %s28
    %s30 = ssub.s32 %s17, %s24
    %s31 = sor.u32 %s29, %s30
    %p32 = scmp.eq.s32.totalorder %s31, 0
    %s34 = sadd.s32 %s33, 1
    %s35 = scalar_select %p32, %s33, %s34
    %p38 = pneg %p32
    %p39 = scmp.eq.s32.totalorder %s9, 7
    %p40 = por %p38, %p39
    %p41 = scmp.ne.s32.totalorder %s33, %s36
    %p42 = scmp.eq.s32.totalorder %s9, 0
    %p43 = por %p41, %p42
    %p44 = scmp.ne.s32.totalorder %s33, %s36
    %p45 = scmp.eq.s32.totalorder %s14, 7
    %p46 = por %p44, %p45
    %p47 = scmp.ne.s32.totalorder %s36, %s37
    %p48 = scmp.eq.s32.totalorder %s14, 0
    %p49 = por %p47, %p48
    %p50 = scmp.ne.s32.totalorder %s36, %s37
    %p51 = scmp.eq.s32.totalorder %s15, 7
    %p52 = por %p50, %p51
    %p54 = scmp.ne.s32.totalorder %s37, %s53
    %p55 = scmp.eq.s32.totalorder %s15, 0
    %p56 = por %p54, %p55
    %s58 = sadd.s32 %s57, 1
    %p61 = scmp.eq.s32.totalorder %s9, 7
    %p62 = scmp.ne.s32.totalorder %s57, %s59
    %p63 = scmp.eq.s32.totalorder %s9, 0
    %p64 = por %p62, %p63
    %p65 = scmp.ne.s32.totalorder %s57, %s59
    %p66 = scmp.eq.s32.totalorder %s14, 7
    %p67 = por %p65, %p66
    %p68 = scmp.ne.s32.totalorder %s59, %s60
    %p69 = scmp.eq.s32.totalorder %s14, 0
    %p70 = por %p68, %p69
    %p71 = scmp.ne.s32.totalorder %s59, %s60
    %p72 = scmp.eq.s32.totalorder %s15, 7
    %p73 = por %p71, %p72
    %p75 = scmp.ne.s32.totalorder %s60, %s74
    %p76 = scmp.eq.s32.totalorder %s15, 0
    %p77 = por %p75, %p76
    %s79 = sadd.s32 %s78, 1
    %p82 = scmp.eq.s32.totalorder %s9, 7
    %p83 = scmp.ne.s32.totalorder %s78, %s80
    %p84 = scmp.eq.s32.totalorder %s9, 0
    %p85 = por %p83, %p84
    %p86 = scmp.ne.s32.totalorder %s78, %s80
    %p87 = scmp.eq.s32.totalorder %s14, 7
    %p88 = por %p86, %p87
    %p89 = scmp.ne.s32.totalorder %s80, %s81
    %p90 = scmp.eq.s32.totalorder %s14, 0
    %p91 = por %p89, %p90
    %p92 = scmp.ne.s32.totalorder %s80, %s81
    %p93 = scmp.eq.s32.totalorder %s15, 7
    %p94 = por %p92, %p93
    %p96 = scmp.ne.s32.totalorder %s81, %s95
    %p97 = scmp.eq.s32.totalorder %s15, 0
    %p98 = por %p96, %p97
    %s99 = ssub.s32 %s16, %s28
    %s100 = ssub.s32 %s17, %s24
    %s101 = sor.u32 %s99, %s100
    %p102 = scmp.eq.s32.totalorder %s101, 0
    %s104 = sadd.s32 %s103, 1
    %s105 = scalar_select %p102, %s103, %s104
    %p108 = pneg %p102
    %p109 = scmp.eq.s32.totalorder %s9, 7
    %p110 = por %p108, %p109
    %p111 = scmp.ne.s32.totalorder %s103, %s106
    %p112 = scmp.eq.s32.totalorder %s9, 0
    %p113 = por %p111, %p112
    %p114 = scmp.ne.s32.totalorder %s103, %s106
    %p115 = scmp.eq.s32.totalorder %s14, 7
    %p116 = por %p114, %p115
    %p117 = scmp.ne.s32.totalorder %s106, %s107
    %p118 = scmp.eq.s32.totalorder %s14, 0
    %p119 = por %p117, %p118
    %p120 = scmp.ne.s32.totalorder %s106, %s107
    %p121 = scmp.eq.s32.totalorder %s15, 7
    %p122 = por %p120, %p121
    %p124 = scmp.ne.s32.totalorder %s107, %s123
    %p125 = scmp.eq.s32.totalorder %s15, 0
    %p126 = por %p124, %p125
    %p127 = scmp.le.s32.totalorder 1, %s9
    %p128 = scmp.lt.s32.totalorder %s9, 9
    %p129 = pnand %p127, %p128
    %p130 = pneg %p129
    // Predicated region
    $region9: #{conv3d_bn_relu.3} parent=5 // pred_check
      _
    $region10: #{conv3d_bn_relu.3} parent=5 // pred_check_branch
      %132 = sbr.rel (%p129) target = $region12
    $region11: #{conv3d_bn_relu.3} parent=5 // pred_region
      %s133 = ssub.s32 %s9, 1
      // Predicated region
      $region13: #{conv3d_bn_relu.3} parent=11 // pred_check
        %p134 = pneg %p70
      $region14: #{conv3d_bn_relu.3} parent=11 // pred_check_branch
        %136 = sbr.rel (%p134) target = $region16
      $region15: #{conv3d_bn_relu.3} parent=11 // pred_region
        _
      $region16: #{conv3d_bn_relu.3} parent=11 // pred_fallthru
        _
      // Predicated region
      $region17: #{conv3d_bn_relu.3} parent=11 // pred_check
        %p137 = pneg %p91
      $region18: #{conv3d_bn_relu.3} parent=11 // pred_check_branch
        %139 = sbr.rel (%p137) target = $region20
      $region19: #{conv3d_bn_relu.3} parent=11 // pred_region
        _
      $region20: #{conv3d_bn_relu.3} parent=11 // pred_fallthru
        _
    $region12: #{conv3d_bn_relu.3} parent=5 // pred_fallthru
      _
    %p140 = scmp.lt.s32.totalorder %s9, 8
    // Predicated region
    $region21: #{conv3d_bn_relu.3} parent=5 // pred_check
      %p141 = pneg %p140
    $region22: #{conv3d_bn_relu.3} parent=5 // pred_check_branch
      %143 = sbr.rel (%p141) target = $region24
    $region23: #{conv3d_bn_relu.3} parent=5 // pred_region
      // Predicated region
      $region25: #{conv3d_bn_relu.3} parent=23 // pred_check
        %p144 = pneg %p43
      $region26: #{conv3d_bn_relu.3} parent=23 // pred_check_branch
        %146 = sbr.rel (%p144) target = $region28
      $region27: #{conv3d_bn_relu.3} parent=23 // pred_region
        %p147 = scmp.lt.s32.totalorder %s16, 1
        %s148 = scalar_select %p147, %s16, 1
        %p149 = scmp.lt.s32.totalorder %s17, 3
        %s150 = scalar_select %p149, %s17, 3
        %s151 = smul.addr %s150, 2
        %s152 = smul.addr %s148, 8
        %s153 = sadd.s32 %s151, %s152
        %s154 = smul.addr %s153, 4
        %s155 = scalar_lea.vmem %s0, %s154
      $region28: #{conv3d_bn_relu.3} parent=23 // pred_fallthru
        _
    $region24: #{conv3d_bn_relu.3} parent=5 // pred_fallthru
      _
    %p156 = scmp.le.s32.totalorder 1, %s9
    %p157 = scmp.lt.s32.totalorder %s9, 9
    %p158 = pnand %p156, %p157
    %p159 = pneg %p158
    // Predicated region
    $region29: #{conv3d_bn_relu.3} parent=5 // pred_check
      _
    $region30: #{conv3d_bn_relu.3} parent=5 // pred_check_branch
      %161 = sbr.rel (%p158) target = $region32
    $region31: #{conv3d_bn_relu.3} parent=5 // pred_region
      %s162 = ssub.s32 %s9, 1
      %p163 = scmp.lt.s32.totalorder %s18, 1
      %s164 = scalar_select %p163, %s18, 1
      %p165 = scmp.lt.s32.totalorder %s19, 3
      %s166 = scalar_select %p165, %s19, 3
      %s167 = smul.addr %s166, 2
      %s168 = smul.addr %s164, 8
      %s169 = sadd.s32 %s167, %s168
      %s170 = smul.addr %s169, 4
      %s171 = scalar_lea.vmem %s0, %s170
      %p172 = pneg %p49
      %p173 = pneg %p46
      %p174 = pneg %p70
      %p175 = pneg %p67
      %p176 = pneg %p91
      %p177 = pneg %p88
      %p178 = pneg %p119
      %p179 = pneg %p116
      %p180 = scmp.lt.s32.totalorder %s18, 1
      %s181 = scalar_select %p180, %s18, 1
      %p182 = scmp.lt.s32.totalorder %s19, 3
      %s183 = scalar_select %p182, %s19, 3
      %s184 = smul.addr %s183, 2
      %s185 = smul.addr %s181, 8
      %s186 = sadd.s32 %s184, %s185
      %s187 = smul.addr %s186, 8
      %s188 = scalar_lea.vmem %s3, %s187
      %p189 = scmp.lt.s32.totalorder %s18, 1
      %s190 = scalar_select %p189, %s18, 1
      %p191 = scmp.lt.s32.totalorder %s19, 3
      %s192 = scalar_select %p191, %s19, 3
      %s193 = smul.addr %s192, 2
      %s194 = smul.addr %s190, 8
      %s195 = sadd.s32 %s193, %s194
      %s196 = smul.addr %s195, 4
      %s197 = scalar_lea.vmem %s0, %s196
      %p198 = scmp.lt.s32.totalorder %s18, 1
      %s199 = scalar_select %p198, %s18, 1
      %p200 = scmp.lt.s32.totalorder %s19, 3
      %s201 = scalar_select %p200, %s19, 3
      %s202 = smul.addr %s201, 2
      %s203 = smul.addr %s199, 8
      %s204 = sadd.s32 %s202, %s203
      %s205 = smul.addr %s204, 8
      %s206 = scalar_lea.vmem %s3, %s205
      %v207 = vld [vmem:[%s197] sm:$0xf]
      %v208 = vld [vmem:[%s197 + $0x4] sm:$0xf]
      %v209 = vunpack.c.l.bf16 %v207
      %v210 = vunpack.c.l.bf16 %v208
      %v211 = vld [vmem:[%s1] sm:$0xff]
      %v212 = vld [vmem:[%s1 + $0x8] sm:$0xff]
      %214 = vset.pattern.permute.xlu0 0
      %215 = vperm.xlu0 %214, %v211
      %v216 = vpop.permute.xlu0 %215
      %219 = vset.pattern.permute.xlu0 0
      %220 = vperm.xlu0 %219, %v212
      %v221 = vpop.permute.xlu0 %220
      %v223 = vmul.f32 %v209, %v216
      %v224 = vmul.f32 %v210, %v221
      %v225 = vld [vmem:[%s2] sm:$0xff]
      %v226 = vld [vmem:[%s2 + $0x8] sm:$0xff]
      %228 = vset.pattern.permute.xlu0 0
      %229 = vperm.xlu0 %228, %v225
      %v230 = vpop.permute.xlu0 %229
      %233 = vset.pattern.permute.xlu0 0
      %234 = vperm.xlu0 %233, %v226
      %v235 = vpop.permute.xlu0 %234
      %v237 = vadd.f32 %v223, %v230
      %v238 = vadd.f32 %v224, %v235
      %v239 = vmax.f32 %v237, 0.0
      %v240 = vmax.f32 %v238, 0.0
      %vm241 = vcmask 130048
      %242 = vst.msk [vmem:[%s206] sm:$0xff] %vm241, %v239
      %243 = vst.msk [vmem:[%s206 + $0x8] sm:$0xff] %vm241, %v240
      %p244 = scmp.lt.s32.totalorder %s18, 1
      %s245 = scalar_select %p244, %s18, 1
      %p246 = scmp.lt.s32.totalorder %s19, 3
      %s247 = scalar_select %p246, %s19, 3
      %s248 = smul.addr %s247, 2
      %s249 = smul.addr %s245, 8
      %s250 = sadd.s32 %s248, %s249
      %s251 = smul.addr %s250, 8
      %s252 = scalar_lea.vmem %s3, %s251
      // Predicated region
      $region33: #{conv3d_bn_relu.3} parent=31 // pred_check
        %p253 = pneg %p116
      $region34: #{conv3d_bn_relu.3} parent=31 // pred_check_branch
        %255 = sbr.rel (%p253) target = $region36
      $region35: #{conv3d_bn_relu.3} parent=31 // pred_region
        _
      $region36: #{conv3d_bn_relu.3} parent=31 // pred_fallthru
        _
    $region32: #{conv3d_bn_relu.3} parent=5 // pred_fallthru
      _
    %p256 = scmp.le.s32.totalorder 2, %s9
    // Predicated region
    $region37: #{conv3d_bn_relu.3} parent=5 // pred_check
      %p257 = pneg %p256
    $region38: #{conv3d_bn_relu.3} parent=5 // pred_check_branch
      %259 = sbr.rel (%p257) target = $region40
    $region39: #{conv3d_bn_relu.3} parent=5 // pred_region
      %s260 = ssub.s32 %s9, 2
      // Predicated region
      $region41: #{conv3d_bn_relu.3} parent=39 // pred_check
        %p261 = pneg %p122
      $region42: #{conv3d_bn_relu.3} parent=39 // pred_check_branch
        %263 = sbr.rel (%p261) target = $region44
      $region43: #{conv3d_bn_relu.3} parent=39 // pred_region
        %p264 = scmp.lt.s32.totalorder %s20, 1
        %s265 = scalar_select %p264, %s20, 1
        %p266 = scmp.lt.s32.totalorder %s21, 3
        %s267 = scalar_select %p266, %s21, 3
        %s268 = smul.addr %s267, 2
        %s269 = smul.addr %s265, 8
        %s270 = sadd.s32 %s268, %s269
        %s271 = smul.addr %s270, 8
        %s272 = scalar_lea.vmem %s3, %s271
      $region44: #{conv3d_bn_relu.3} parent=39 // pred_fallthru
        _
    $region40: #{conv3d_bn_relu.3} parent=5 // pred_fallthru
      _
  $region6: #{conv3d_bn_relu.3} parent=0 // loop_footer
    %s13 = sadd.s32 1, %s9
  $region7: #{conv3d_bn_relu.3} parent=0 // loop_footer_branch
    %8 = sbr.rel target = $region3
  $region8: #{conv3d_bn_relu.3} parent=0 // loop_exit
    _

</llo_original>
